<compile_context>
chip_gen: v5e
topology: v5e:2x2
jax: 0.10.0
libtpu: 0.0.40
codegen_flags: <defaults>
</compile_context>

<pallas_src>
import jax
import jax.numpy as jnp
from jax import lax
from jax.experimental import pallas as pl
from jax.experimental.pallas import tpu as pltpu


def _compl_mul2d_kernel(are_ref, aim_ref, wre_ref, wsum_ref, wdif_ref,
                        ore_ref, oim_ref):
    # Block shapes (leading size-1 corner dim squeezed away by BlockSpec):
    #   are/aim:       (I, B, Mp)   -- one corner, all batches & in-channels
    #   wre/wsum/wdif: (I, O, Mp)   -- one corner, all in/out channels
    #   ore/oim:       (B, O, Mp)
    I = wre_ref.shape[0]
    B, O, Mp = ore_ref.shape

    def body(i, carry):
        acc_re, acc_im = carry
        ar = are_ref[i]                                   # (B, Mp)
        ai = aim_ref[i]
        wr = wre_ref[i]                                   # (O, Mp)
        ws = wsum_ref[i]                                  # wr + wi (hoisted)
        wd = wdif_ref[i]                                  # wi - wr (hoisted)
        # 3-multiply complex product with hoisted weight sums/differences:
        #   k1 = wr*(ar+ai);  re += k1 - ai*(wr+wi);  im += k1 + ar*(wi-wr)
        k1 = (ar + ai)[:, None, :] * wr[None, :, :]       # (B, O, Mp)
        acc_re = acc_re + (k1 - ai[:, None, :] * ws[None, :, :])
        acc_im = acc_im + (k1 + ar[:, None, :] * wd[None, :, :])
        return acc_re, acc_im

    zero = jnp.zeros((B, O, Mp), jnp.float32)
    acc_re, acc_im = lax.fori_loop(0, I, body, (zero, zero), unroll=True)
    ore_ref[...] = acc_re
    oim_ref[...] = acc_im


def compl_mul2d_pallas(a_re, a_im, w_re, w_sum, w_dif):
    """out[c,b,o,m] = sum_i a[c,i,b,m] * w[c,i,o,m]  (complex, split re/im).

    a_*: (2, I, B, Mp)   w_*: (2, I, O, Mp)   ->   (2, B, O, Mp) each.
    The lane axis Mp must be a multiple of 128 (zero-padded in the wrapper).
    """
    C2, I, B, Mp = a_re.shape
    C2w, Iw, O, Mpw = w_re.shape
    assert (C2, I, Mp) == (C2w, Iw, Mpw)
    assert Mp % 128 == 0

    sq = pl.Squeezed()
    a_spec = pl.BlockSpec((sq, I, B, Mp), lambda c: (c, 0, 0, 0))
    w_spec = pl.BlockSpec((sq, I, O, Mp), lambda c: (c, 0, 0, 0))
    o_spec = pl.BlockSpec((sq, B, O, Mp), lambda c: (c, 0, 0, 0))

    out_shape = (
        jax.ShapeDtypeStruct((C2, B, O, Mp), jnp.float32),
        jax.ShapeDtypeStruct((C2, B, O, Mp), jnp.float32),
    )

    # Advisory cost hint so XLA schedules this against the surrounding FFTs.
    flops = 6 * C2 * B * I * O * Mp
    bytes_accessed = 4 * (2 * a_re.size + 3 * w_re.size + 2 * C2 * B * O * Mp)
    cost = pl.CostEstimate(flops=flops, transcendentals=0,
                           bytes_accessed=bytes_accessed)

    return pl.pallas_call(
        _compl_mul2d_kernel,
        out_shape=out_shape,
        grid_spec=pltpu.PrefetchScalarGridSpec(
            num_scalar_prefetch=0,
            grid=(C2,),                       # one step per frequency corner
            in_specs=[a_spec, a_spec, w_spec, w_spec, w_spec],
            out_specs=[o_spec, o_spec],
        ),
        compiler_params=pltpu.CompilerParams(
            dimension_semantics=("parallel",),   # v7x: one corner per TC
        ),
        cost_estimate=cost,
    )(a_re, a_im, w_re, w_sum, w_dif)


def spectral_conv2d(x, weights1, weights2, modes1, modes2):
    """Forward pass of SpectralConv2d.

    x:        (B, Cin, H, W) float32              (NCHW, same as PyTorch)
    weights1: (Cin, Cout, modes1, modes2, 2)      (last dim = [real, imag])
    weights2: (Cin, Cout, modes1, modes2, 2)
    returns:  (B, Cout, H, W) float32
    """
    B, Cin, H, W = x.shape
    Cout = weights1.shape[1]
    Wf = W // 2 + 1
    M = modes1 * modes2
    Mp = max(128, ((M + 127) // 128) * 128)   # lane-dense (multiple of 128)

    # TODO(synk): FFT has no Pallas TPU primitive; rfft2/irfft2 stay in XLA.
    # torch.rfft(..., normalized=True, onesided=True) == rfft2 with norm='ortho'
    x_ft = jnp.fft.rfft2(x, norm="ortho")                  # (B, Cin, H, Wf) c64

    # Stack the two frequency corners on a leading axis, put in-channels
    # leading (for ref[i] indexing in the kernel), flatten modes onto the lane
    # axis and zero-pad to Mp lanes — all in one marshalling pass.
    a = jnp.stack(
        [x_ft[:, :, :modes1, :modes2], x_ft[:, :, H - modes1:, :modes2]],
        axis=0)                                            # (2, B, Cin, m1, m2)
    a = a.transpose(0, 2, 1, 3, 4).reshape(2, Cin, B, M)   # (2, Cin, B, M)
    pad_a = ((0, 0), (0, 0), (0, 0), (0, Mp - M))
    a_re = jnp.pad(jnp.real(a).astype(jnp.float32), pad_a)
    a_im = jnp.pad(jnp.imag(a).astype(jnp.float32), pad_a)

    w = jnp.stack([weights1, weights2], axis=0)            # (2,Cin,Cout,m1,m2,2)
    wr = w[..., 0].astype(jnp.float32).reshape(2, Cin, Cout, M)
    wi = w[..., 1].astype(jnp.float32).reshape(2, Cin, Cout, M)
    pad_w = ((0, 0), (0, 0), (0, 0), (0, Mp - M))
    w_re = jnp.pad(wr, pad_w)
    w_sum = jnp.pad(wr + wi, pad_w)                        # hoisted Karatsuba
    w_dif = jnp.pad(wi - wr, pad_w)                        # combinations

    o_re, o_im = compl_mul2d_pallas(a_re, a_im, w_re, w_sum, w_dif)
    # (2, B, Cout, Mp) each — drop the padded lanes, restore (m1, m2).
    o = jax.lax.complex(o_re[..., :M], o_im[..., :M])
    o = o.reshape(2, B, Cout, modes1, modes2)

    # Assemble the padded spectrum.  When the corners don't overlap, build it
    # with pad + concatenate (no zero-init + double scatter round trips);
    # otherwise fall back to scatter with the PyTorch overwrite semantics.
    if 2 * modes1 <= H:
        top = jnp.pad(o[0], ((0, 0), (0, 0), (0, 0), (0, Wf - modes2)))
        bot = jnp.pad(o[1], ((0, 0), (0, 0), (0, 0), (0, Wf - modes2)))
        mid = jnp.zeros((B, Cout, H - 2 * modes1, Wf), dtype=top.dtype)
        out_ft = jnp.concatenate([top, mid, bot], axis=2)
    else:
        out_ft = jnp.zeros((B, Cout, H, Wf), dtype=jnp.complex64)
        out_ft = out_ft.at[:, :, :modes1, :modes2].set(o[0])
        out_ft = out_ft.at[:, :, H - modes1:, :modes2].set(o[1])

    # torch.irfft(..., normalized=True, onesided=True, signal_sizes=(H, W))
    return jnp.fft.irfft2(out_ft, s=(H, W), norm="ortho").astype(jnp.float32)


def _reference_compl_mul2d(a, w):
    # pure-JAX reference of compl_mul2d (complex arithmetic via einsum)
    wr, wi = w[..., 0], w[..., 1]
    op = lambda x, y: jnp.einsum("bixy,ioxy->boxy", x, y)
    re = op(jnp.real(a), wr) - op(jnp.imag(a), wi)
    im = op(jnp.imag(a), wr) + op(jnp.real(a), wi)
    return re + 1j * im


if __name__ == "__main__":
    # Module config (in_channels == out_channels, matching the original
    # module's out_ft allocation which assumes this).
    in_channels = 4
    out_channels = 4
    modes1 = 6
    modes2 = 6

    B, H, W = 2, 16, 16

    key = jax.random.PRNGKey(0)
    kx, k1, k2 = jax.random.split(key, 3)

    scale = 1.0 / (in_channels * out_channels)
    x = jax.random.normal(kx, (B, in_channels, H, W), dtype=jnp.float32)
    weights1 = scale * jax.random.uniform(
        k1, (in_channels, out_channels, modes1, modes2, 2), dtype=jnp.float32)
    weights2 = scale * jax.random.uniform(
        k2, (in_channels, out_channels, modes1, modes2, 2), dtype=jnp.float32)

    out = spectral_conv2d(x, weights1, weights2, modes1, modes2)
    out = jax.block_until_ready(out)
    assert out.shape == (B, out_channels, H, W), out.shape

    # Cross-check the Pallas hot path against a pure-JAX reference forward.
    x_ft = jnp.fft.rfft2(x, norm="ortho")
    out_ft_ref = jnp.zeros((B, out_channels, H, W // 2 + 1), dtype=jnp.complex64)
    out_ft_ref = out_ft_ref.at[:, :, :modes1, :modes2].set(
        _reference_compl_mul2d(x_ft[:, :, :modes1, :modes2], weights1))
    out_ft_ref = out_ft_ref.at[:, :, H - modes1:, :modes2].set(
        _reference_compl_mul2d(x_ft[:, :, -modes1:, :modes2], weights2))
    out_ref = jnp.fft.irfft2(out_ft_ref, s=(H, W), norm="ortho")

    assert jnp.allclose(out, out_ref, atol=1e-5, rtol=1e-5)
    print("KERNEL_OK")
</pallas_src>

<mosaic_0001>
module attributes {stable_mosaic.version = 11 : i64} {
  func.func @_compl_mul2d_kernel(%arg0: i32, %arg1: memref<1x4x2x128xf32, #tpu.memory_space<vmem>>, %arg2: memref<1x4x2x128xf32, #tpu.memory_space<vmem>>, %arg3: memref<1x4x4x128xf32, #tpu.memory_space<vmem>>, %arg4: memref<1x4x4x128xf32, #tpu.memory_space<vmem>>, %arg5: memref<1x4x4x128xf32, #tpu.memory_space<vmem>>, %arg6: memref<1x2x4x128xf32, #tpu.memory_space<vmem>>, %arg7: memref<1x2x4x128xf32, #tpu.memory_space<vmem>>) attributes {dimension_semantics = [#tpu.dimension_semantics<parallel>], iteration_bounds = array<i64: 2>, scalar_prefetch = 0 : i64, scratch_operands = 0 : i64, tpu.core_type = #tpu.core_type<tc>, window_params = [{transform_indices = @transform_0, window_bounds = array<i64: 1, 4, 2, 128>}, {transform_indices = @transform_1, window_bounds = array<i64: 1, 4, 2, 128>}, {transform_indices = @transform_2, window_bounds = array<i64: 1, 4, 4, 128>}, {transform_indices = @transform_3, window_bounds = array<i64: 1, 4, 4, 128>}, {transform_indices = @transform_4, window_bounds = array<i64: 1, 4, 4, 128>}, {transform_indices = @transform_5, window_bounds = array<i64: 1, 2, 4, 128>}, {transform_indices = @transform_6, window_bounds = array<i64: 1, 2, 4, 128>}]} {
    %cst = arith.constant 0.000000e+00 : f32
    %0 = vector.broadcast %cst : f32 to vector<2x4x128xf32>
    %c0_i32 = arith.constant 0 : i32
    %c0 = arith.constant 0 : index
    %1 = arith.index_cast %c0_i32 : i32 to index
    %c0_0 = arith.constant 0 : index
    %c0_1 = arith.constant 0 : index
    %2 = vector.load %arg1[%c0, %1, %c0_0, %c0_1] : memref<1x4x2x128xf32, #tpu.memory_space<vmem>>, vector<1x1x2x128xf32>
    %3 = vector.shape_cast %2 : vector<1x1x2x128xf32> to vector<2x128xf32>
    %c0_2 = arith.constant 0 : index
    %4 = arith.index_cast %c0_i32 : i32 to index
    %c0_3 = arith.constant 0 : index
    %c0_4 = arith.constant 0 : index
    %5 = vector.load %arg2[%c0_2, %4, %c0_3, %c0_4] : memref<1x4x2x128xf32, #tpu.memory_space<vmem>>, vector<1x1x2x128xf32>
    %6 = vector.shape_cast %5 : vector<1x1x2x128xf32> to vector<2x128xf32>
    %c0_5 = arith.constant 0 : index
    %7 = arith.index_cast %c0_i32 : i32 to index
    %c0_6 = arith.constant 0 : index
    %c0_7 = arith.constant 0 : index
    %8 = vector.load %arg3[%c0_5, %7, %c0_6, %c0_7] : memref<1x4x4x128xf32, #tpu.memory_space<vmem>>, vector<1x1x4x128xf32>
    %9 = vector.shape_cast %8 : vector<1x1x4x128xf32> to vector<4x128xf32>
    %c0_8 = arith.constant 0 : index
    %10 = arith.index_cast %c0_i32 : i32 to index
    %c0_9 = arith.constant 0 : index
    %c0_10 = arith.constant 0 : index
    %11 = vector.load %arg4[%c0_8, %10, %c0_9, %c0_10] : memref<1x4x4x128xf32, #tpu.memory_space<vmem>>, vector<1x1x4x128xf32>
    %12 = vector.shape_cast %11 : vector<1x1x4x128xf32> to vector<4x128xf32>
    %c0_11 = arith.constant 0 : index
    %13 = arith.index_cast %c0_i32 : i32 to index
    %c0_12 = arith.constant 0 : index
    %c0_13 = arith.constant 0 : index
    %14 = vector.load %arg5[%c0_11, %13, %c0_12, %c0_13] : memref<1x4x4x128xf32, #tpu.memory_space<vmem>>, vector<1x1x4x128xf32>
    %15 = vector.shape_cast %14 : vector<1x1x4x128xf32> to vector<4x128xf32>
    %16 = arith.addf %3, %6 : vector<2x128xf32>
    %17 = vector.shape_cast %16 : vector<2x128xf32> to vector<2x1x128xf32>
    %18 = vector.shape_cast %9 : vector<4x128xf32> to vector<1x4x128xf32>
    %19 = vector.broadcast %17 : vector<2x1x128xf32> to vector<2x4x128xf32>
    %20 = vector.broadcast %18 : vector<1x4x128xf32> to vector<2x4x128xf32>
    %21 = arith.mulf %19, %20 : vector<2x4x128xf32>
    %22 = vector.shape_cast %6 : vector<2x128xf32> to vector<2x1x128xf32>
    %23 = vector.shape_cast %12 : vector<4x128xf32> to vector<1x4x128xf32>
    %24 = vector.broadcast %22 : vector<2x1x128xf32> to vector<2x4x128xf32>
    %25 = vector.broadcast %23 : vector<1x4x128xf32> to vector<2x4x128xf32>
    %26 = arith.mulf %24, %25 : vector<2x4x128xf32>
    %27 = arith.subf %21, %26 : vector<2x4x128xf32>
    %28 = arith.addf %0, %27 : vector<2x4x128xf32>
    %29 = vector.shape_cast %3 : vector<2x128xf32> to vector<2x1x128xf32>
    %30 = vector.shape_cast %15 : vector<4x128xf32> to vector<1x4x128xf32>
    %31 = vector.broadcast %29 : vector<2x1x128xf32> to vector<2x4x128xf32>
    %32 = vector.broadcast %30 : vector<1x4x128xf32> to vector<2x4x128xf32>
    %33 = arith.mulf %31, %32 : vector<2x4x128xf32>
    %34 = arith.addf %21, %33 : vector<2x4x128xf32>
    %35 = arith.addf %0, %34 : vector<2x4x128xf32>
    %c1_i32 = arith.constant 1 : i32
    %c0_14 = arith.constant 0 : index
    %36 = arith.index_cast %c1_i32 : i32 to index
    %c0_15 = arith.constant 0 : index
    %c0_16 = arith.constant 0 : index
    %37 = vector.load %arg1[%c0_14, %36, %c0_15, %c0_16] : memref<1x4x2x128xf32, #tpu.memory_space<vmem>>, vector<1x1x2x128xf32>
    %38 = vector.shape_cast %37 : vector<1x1x2x128xf32> to vector<2x128xf32>
    %c0_17 = arith.constant 0 : index
    %39 = arith.index_cast %c1_i32 : i32 to index
    %c0_18 = arith.constant 0 : index
    %c0_19 = arith.constant 0 : index
    %40 = vector.load %arg2[%c0_17, %39, %c0_18, %c0_19] : memref<1x4x2x128xf32, #tpu.memory_space<vmem>>, vector<1x1x2x128xf32>
    %41 = vector.shape_cast %40 : vector<1x1x2x128xf32> to vector<2x128xf32>
    %c0_20 = arith.constant 0 : index
    %42 = arith.index_cast %c1_i32 : i32 to index
    %c0_21 = arith.constant 0 : index
    %c0_22 = arith.constant 0 : index
    %43 = vector.load %arg3[%c0_20, %42, %c0_21, %c0_22] : memref<1x4x4x128xf32, #tpu.memory_space<vmem>>, vector<1x1x4x128xf32>
    %44 = vector.shape_cast %43 : vector<1x1x4x128xf32> to vector<4x128xf32>
    %c0_23 = arith.constant 0 : index
    %45 = arith.index_cast %c1_i32 : i32 to index
    %c0_24 = arith.constant 0 : index
    %c0_25 = arith.constant 0 : index
    %46 = vector.load %arg4[%c0_23, %45, %c0_24, %c0_25] : memref<1x4x4x128xf32, #tpu.memory_space<vmem>>, vector<1x1x4x128xf32>
    %47 = vector.shape_cast %46 : vector<1x1x4x128xf32> to vector<4x128xf32>
    %c0_26 = arith.constant 0 : index
    %48 = arith.index_cast %c1_i32 : i32 to index
    %c0_27 = arith.constant 0 : index
    %c0_28 = arith.constant 0 : index
    %49 = vector.load %arg5[%c0_26, %48, %c0_27, %c0_28] : memref<1x4x4x128xf32, #tpu.memory_space<vmem>>, vector<1x1x4x128xf32>
    %50 = vector.shape_cast %49 : vector<1x1x4x128xf32> to vector<4x128xf32>
    %51 = arith.addf %38, %41 : vector<2x128xf32>
    %52 = vector.shape_cast %51 : vector<2x128xf32> to vector<2x1x128xf32>
    %53 = vector.shape_cast %44 : vector<4x128xf32> to vector<1x4x128xf32>
    %54 = vector.broadcast %52 : vector<2x1x128xf32> to vector<2x4x128xf32>
    %55 = vector.broadcast %53 : vector<1x4x128xf32> to vector<2x4x128xf32>
    %56 = arith.mulf %54, %55 : vector<2x4x128xf32>
    %57 = vector.shape_cast %41 : vector<2x128xf32> to vector<2x1x128xf32>
    %58 = vector.shape_cast %47 : vector<4x128xf32> to vector<1x4x128xf32>
    %59 = vector.broadcast %57 : vector<2x1x128xf32> to vector<2x4x128xf32>
    %60 = vector.broadcast %58 : vector<1x4x128xf32> to vector<2x4x128xf32>
    %61 = arith.mulf %59, %60 : vector<2x4x128xf32>
    %62 = arith.subf %56, %61 : vector<2x4x128xf32>
    %63 = arith.addf %28, %62 : vector<2x4x128xf32>
    %64 = vector.shape_cast %38 : vector<2x128xf32> to vector<2x1x128xf32>
    %65 = vector.shape_cast %50 : vector<4x128xf32> to vector<1x4x128xf32>
    %66 = vector.broadcast %64 : vector<2x1x128xf32> to vector<2x4x128xf32>
    %67 = vector.broadcast %65 : vector<1x4x128xf32> to vector<2x4x128xf32>
    %68 = arith.mulf %66, %67 : vector<2x4x128xf32>
    %69 = arith.addf %56, %68 : vector<2x4x128xf32>
    %70 = arith.addf %35, %69 : vector<2x4x128xf32>
    %c2_i32 = arith.constant 2 : i32
    %c0_29 = arith.constant 0 : index
    %71 = arith.index_cast %c2_i32 : i32 to index
    %c0_30 = arith.constant 0 : index
    %c0_31 = arith.constant 0 : index
    %72 = vector.load %arg1[%c0_29, %71, %c0_30, %c0_31] : memref<1x4x2x128xf32, #tpu.memory_space<vmem>>, vector<1x1x2x128xf32>
    %73 = vector.shape_cast %72 : vector<1x1x2x128xf32> to vector<2x128xf32>
    %c0_32 = arith.constant 0 : index
    %74 = arith.index_cast %c2_i32 : i32 to index
    %c0_33 = arith.constant 0 : index
    %c0_34 = arith.constant 0 : index
    %75 = vector.load %arg2[%c0_32, %74, %c0_33, %c0_34] : memref<1x4x2x128xf32, #tpu.memory_space<vmem>>, vector<1x1x2x128xf32>
    %76 = vector.shape_cast %75 : vector<1x1x2x128xf32> to vector<2x128xf32>
    %c0_35 = arith.constant 0 : index
    %77 = arith.index_cast %c2_i32 : i32 to index
    %c0_36 = arith.constant 0 : index
    %c0_37 = arith.constant 0 : index
    %78 = vector.load %arg3[%c0_35, %77, %c0_36, %c0_37] : memref<1x4x4x128xf32, #tpu.memory_space<vmem>>, vector<1x1x4x128xf32>
    %79 = vector.shape_cast %78 : vector<1x1x4x128xf32> to vector<4x128xf32>
    %c0_38 = arith.constant 0 : index
    %80 = arith.index_cast %c2_i32 : i32 to index
    %c0_39 = arith.constant 0 : index
    %c0_40 = arith.constant 0 : index
    %81 = vector.load %arg4[%c0_38, %80, %c0_39, %c0_40] : memref<1x4x4x128xf32, #tpu.memory_space<vmem>>, vector<1x1x4x128xf32>
    %82 = vector.shape_cast %81 : vector<1x1x4x128xf32> to vector<4x128xf32>
    %c0_41 = arith.constant 0 : index
    %83 = arith.index_cast %c2_i32 : i32 to index
    %c0_42 = arith.constant 0 : index
    %c0_43 = arith.constant 0 : index
    %84 = vector.load %arg5[%c0_41, %83, %c0_42, %c0_43] : memref<1x4x4x128xf32, #tpu.memory_space<vmem>>, vector<1x1x4x128xf32>
    %85 = vector.shape_cast %84 : vector<1x1x4x128xf32> to vector<4x128xf32>
    %86 = arith.addf %73, %76 : vector<2x128xf32>
    %87 = vector.shape_cast %86 : vector<2x128xf32> to vector<2x1x128xf32>
    %88 = vector.shape_cast %79 : vector<4x128xf32> to vector<1x4x128xf32>
    %89 = vector.broadcast %87 : vector<2x1x128xf32> to vector<2x4x128xf32>
    %90 = vector.broadcast %88 : vector<1x4x128xf32> to vector<2x4x128xf32>
    %91 = arith.mulf %89, %90 : vector<2x4x128xf32>
    %92 = vector.shape_cast %76 : vector<2x128xf32> to vector<2x1x128xf32>
    %93 = vector.shape_cast %82 : vector<4x128xf32> to vector<1x4x128xf32>
    %94 = vector.broadcast %92 : vector<2x1x128xf32> to vector<2x4x128xf32>
    %95 = vector.broadcast %93 : vector<1x4x128xf32> to vector<2x4x128xf32>
    %96 = arith.mulf %94, %95 : vector<2x4x128xf32>
    %97 = arith.subf %91, %96 : vector<2x4x128xf32>
    %98 = arith.addf %63, %97 : vector<2x4x128xf32>
    %99 = vector.shape_cast %73 : vector<2x128xf32> to vector<2x1x128xf32>
    %100 = vector.shape_cast %85 : vector<4x128xf32> to vector<1x4x128xf32>
    %101 = vector.broadcast %99 : vector<2x1x128xf32> to vector<2x4x128xf32>
    %102 = vector.broadcast %100 : vector<1x4x128xf32> to vector<2x4x128xf32>
    %103 = arith.mulf %101, %102 : vector<2x4x128xf32>
    %104 = arith.addf %91, %103 : vector<2x4x128xf32>
    %105 = arith.addf %70, %104 : vector<2x4x128xf32>
    %c3_i32 = arith.constant 3 : i32
    %c0_44 = arith.constant 0 : index
    %106 = arith.index_cast %c3_i32 : i32 to index
    %c0_45 = arith.constant 0 : index
    %c0_46 = arith.constant 0 : index
    %107 = vector.load %arg1[%c0_44, %106, %c0_45, %c0_46] : memref<1x4x2x128xf32, #tpu.memory_space<vmem>>, vector<1x1x2x128xf32>
    %108 = vector.shape_cast %107 : vector<1x1x2x128xf32> to vector<2x128xf32>
    %c0_47 = arith.constant 0 : index
    %109 = arith.index_cast %c3_i32 : i32 to index
    %c0_48 = arith.constant 0 : index
    %c0_49 = arith.constant 0 : index
    %110 = vector.load %arg2[%c0_47, %109, %c0_48, %c0_49] : memref<1x4x2x128xf32, #tpu.memory_space<vmem>>, vector<1x1x2x128xf32>
    %111 = vector.shape_cast %110 : vector<1x1x2x128xf32> to vector<2x128xf32>
    %c0_50 = arith.constant 0 : index
    %112 = arith.index_cast %c3_i32 : i32 to index
    %c0_51 = arith.constant 0 : index
    %c0_52 = arith.constant 0 : index
    %113 = vector.load %arg3[%c0_50, %112, %c0_51, %c0_52] : memref<1x4x4x128xf32, #tpu.memory_space<vmem>>, vector<1x1x4x128xf32>
    %114 = vector.shape_cast %113 : vector<1x1x4x128xf32> to vector<4x128xf32>
    %c0_53 = arith.constant 0 : index
    %115 = arith.index_cast %c3_i32 : i32 to index
    %c0_54 = arith.constant 0 : index
    %c0_55 = arith.constant 0 : index
    %116 = vector.load %arg4[%c0_53, %115, %c0_54, %c0_55] : memref<1x4x4x128xf32, #tpu.memory_space<vmem>>, vector<1x1x4x128xf32>
    %117 = vector.shape_cast %116 : vector<1x1x4x128xf32> to vector<4x128xf32>
    %c0_56 = arith.constant 0 : index
    %118 = arith.index_cast %c3_i32 : i32 to index
    %c0_57 = arith.constant 0 : index
    %c0_58 = arith.constant 0 : index
    %119 = vector.load %arg5[%c0_56, %118, %c0_57, %c0_58] : memref<1x4x4x128xf32, #tpu.memory_space<vmem>>, vector<1x1x4x128xf32>
    %120 = vector.shape_cast %119 : vector<1x1x4x128xf32> to vector<4x128xf32>
    %121 = arith.addf %108, %111 : vector<2x128xf32>
    %122 = vector.shape_cast %121 : vector<2x128xf32> to vector<2x1x128xf32>
    %123 = vector.shape_cast %114 : vector<4x128xf32> to vector<1x4x128xf32>
    %124 = vector.broadcast %122 : vector<2x1x128xf32> to vector<2x4x128xf32>
    %125 = vector.broadcast %123 : vector<1x4x128xf32> to vector<2x4x128xf32>
    %126 = arith.mulf %124, %125 : vector<2x4x128xf32>
    %127 = vector.shape_cast %111 : vector<2x128xf32> to vector<2x1x128xf32>
    %128 = vector.shape_cast %117 : vector<4x128xf32> to vector<1x4x128xf32>
    %129 = vector.broadcast %127 : vector<2x1x128xf32> to vector<2x4x128xf32>
    %130 = vector.broadcast %128 : vector<1x4x128xf32> to vector<2x4x128xf32>
    %131 = arith.mulf %129, %130 : vector<2x4x128xf32>
    %132 = arith.subf %126, %131 : vector<2x4x128xf32>
    %133 = arith.addf %98, %132 : vector<2x4x128xf32>
    %134 = vector.shape_cast %108 : vector<2x128xf32> to vector<2x1x128xf32>
    %135 = vector.shape_cast %120 : vector<4x128xf32> to vector<1x4x128xf32>
    %136 = vector.broadcast %134 : vector<2x1x128xf32> to vector<2x4x128xf32>
    %137 = vector.broadcast %135 : vector<1x4x128xf32> to vector<2x4x128xf32>
    %138 = arith.mulf %136, %137 : vector<2x4x128xf32>
    %139 = arith.addf %126, %138 : vector<2x4x128xf32>
    %140 = arith.addf %105, %139 : vector<2x4x128xf32>
    %c4_i32 = arith.constant 4 : i32
    %c0_59 = arith.constant 0 : index
    %c0_60 = arith.constant 0 : index
    %c0_61 = arith.constant 0 : index
    %c0_62 = arith.constant 0 : index
    %141 = vector.load %arg6[%c0_59, %c0_60, %c0_61, %c0_62] : memref<1x2x4x128xf32, #tpu.memory_space<vmem>>, vector<1x2x4x128xf32>
    %142 = vector.shape_cast %141 : vector<1x2x4x128xf32> to vector<2x4x128xf32>
    %143 = vector.shape_cast %133 : vector<2x4x128xf32> to vector<1x2x4x128xf32>
    tpu.vector_store %arg6[%c0_59, %c0_60, %c0_61, %c0_62], %143 {strides = array<i32>} : memref<1x2x4x128xf32, #tpu.memory_space<vmem>>, vector<1x2x4x128xf32>,
    %c0_63 = arith.constant 0 : index
    %c0_64 = arith.constant 0 : index
    %c0_65 = arith.constant 0 : index
    %c0_66 = arith.constant 0 : index
    %144 = vector.load %arg7[%c0_63, %c0_64, %c0_65, %c0_66] : memref<1x2x4x128xf32, #tpu.memory_space<vmem>>, vector<1x2x4x128xf32>
    %145 = vector.shape_cast %144 : vector<1x2x4x128xf32> to vector<2x4x128xf32>
    %146 = vector.shape_cast %140 : vector<2x4x128xf32> to vector<1x2x4x128xf32>
    tpu.vector_store %arg7[%c0_63, %c0_64, %c0_65, %c0_66], %146 {strides = array<i32>} : memref<1x2x4x128xf32, #tpu.memory_space<vmem>>, vector<1x2x4x128xf32>,
    return
  }
  func.func @transform_0(%arg0: i32) -> (i32, i32, i32, i32) {
    %c0_i32 = arith.constant 0 : i32
    %c0_i32_0 = arith.constant 0 : i32
    %c0_i32_1 = arith.constant 0 : i32
    %c0_i32_2 = arith.constant 0 : i32
    return %arg0, %c0_i32, %c0_i32_0, %c0_i32_1 : i32, i32, i32, i32
  }
  func.func @transform_1(%arg0: i32) -> (i32, i32, i32, i32) {
    %c0_i32 = arith.constant 0 : i32
    %c0_i32_0 = arith.constant 0 : i32
    %c0_i32_1 = arith.constant 0 : i32
    %c0_i32_2 = arith.constant 0 : i32
    return %arg0, %c0_i32, %c0_i32_0, %c0_i32_1 : i32, i32, i32, i32
  }
  func.func @transform_2(%arg0: i32) -> (i32, i32, i32, i32) {
    %c0_i32 = arith.constant 0 : i32
    %c0_i32_0 = arith.constant 0 : i32
    %c0_i32_1 = arith.constant 0 : i32
    %c0_i32_2 = arith.constant 0 : i32
    return %arg0, %c0_i32, %c0_i32_0, %c0_i32_1 : i32, i32, i32, i32
  }
  func.func @transform_3(%arg0: i32) -> (i32, i32, i32, i32) {
    %c0_i32 = arith.constant 0 : i32
    %c0_i32_0 = arith.constant 0 : i32
    %c0_i32_1 = arith.constant 0 : i32
    %c0_i32_2 = arith.constant 0 : i32
    return %arg0, %c0_i32, %c0_i32_0, %c0_i32_1 : i32, i32, i32, i32
  }
  func.func @transform_4(%arg0: i32) -> (i32, i32, i32, i32) {
    %c0_i32 = arith.constant 0 : i32
    %c0_i32_0 = arith.constant 0 : i32
    %c0_i32_1 = arith.constant 0 : i32
    %c0_i32_2 = arith.constant 0 : i32
    return %arg0, %c0_i32, %c0_i32_0, %c0_i32_1 : i32, i32, i32, i32
  }
  func.func @transform_5(%arg0: i32) -> (i32, i32, i32, i32) {
    %c0_i32 = arith.constant 0 : i32
    %c0_i32_0 = arith.constant 0 : i32
    %c0_i32_1 = arith.constant 0 : i32
    %c0_i32_2 = arith.constant 0 : i32
    return %arg0, %c0_i32, %c0_i32_0, %c0_i32_1 : i32, i32, i32, i32
  }
  func.func @transform_6(%arg0: i32) -> (i32, i32, i32, i32) {
    %c0_i32 = arith.constant 0 : i32
    %c0_i32_0 = arith.constant 0 : i32
    %c0_i32_1 = arith.constant 0 : i32
    %c0_i32_2 = arith.constant 0 : i32
    return %arg0, %c0_i32, %c0_i32_0, %c0_i32_1 : i32, i32, i32, i32
  }
}

</mosaic_0001>

<llo_original>
// kernel: tpu_custom_call.1
$region0: #{tpu_custom_call.1}
  #allocation0 [shape = 'u32[]', space=smem, size = 0x4, offset = 0x4, fixed_abs, tag = 'smem constant byte address 0x4 - core index']
  #allocation1 [shape = 'u32[72,128]{1,0:T(1,128)}', space=vmem, size = 0x9000, scoped, tag = 'internal scratch']
  %s0 = inlined_call_operand.hbm [shape: f32[2,4,2,128], index: 0, kind: input, shape index: {}]
  %s1 = inlined_call_operand.hbm [shape: f32[2,4,2,128], index: 1, kind: input, shape index: {}]
  %s2 = inlined_call_operand.hbm [shape: f32[2,4,4,128], index: 2, kind: input, shape index: {}]
  %s3 = inlined_call_operand.hbm [shape: f32[2,4,4,128], index: 3, kind: input, shape index: {}]
  %s4 = inlined_call_operand.hbm [shape: f32[2,4,4,128], index: 4, kind: input, shape index: {}]
  %s5 = inlined_call_operand.hbm [shape: f32[2,2,4,128], index: 5, kind: output, shape index: {0}]
  %s6 = inlined_call_operand.hbm [shape: f32[2,2,4,128], index: 6, kind: output, shape index: {1}]
  %7 = xla_tuple %s5, %s6
  %s8 = sld [smem:[#allocation0]]
  $region81: #{tpu_custom_call.1} parent=0
    _
  %s10 = ssub.s32 1, %s8
  %s11 = scalar_select 0, %s10, %s8
  $region1: #{tpu_custom_call.1} parent=0
    #allocation2 [shape = 'u8[8192]{0}', space=vmem, size = 0x2000, scoped, tag = 'input window, operand 0']
    #allocation3 [shape = 's32[2]{0}', space=sflag, size = 0x8, scoped, tag = 'scoped memory for tpu_custom_call.1']
    #allocation4 [shape = 's32[2]{0}', space=sflag, size = 0x8, scoped, tag = 'scoped memory for tpu_custom_call.1']
    #allocation5 [shape = 'u8[8192]{0}', space=vmem, size = 0x2000, scoped, tag = 'input window, operand 1']
    #allocation6 [shape = 's32[2]{0}', space=sflag, size = 0x8, scoped, tag = 'scoped memory for tpu_custom_call.1']
    #allocation7 [shape = 'u8[16384]{0}', space=vmem, size = 0x4000, scoped, tag = 'input window, operand 2']
    #allocation8 [shape = 'u8[16384]{0}', space=vmem, size = 0x4000, scoped, tag = 'input window, operand 3']
    #allocation9 [shape = 's32[2]{0}', space=sflag, size = 0x8, scoped, tag = 'scoped memory for tpu_custom_call.1']
    #allocation10 [shape = 'u8[16384]{0}', space=vmem, size = 0x4000, scoped, tag = 'input window, operand 4']
    #allocation11 [shape = 'u8[8192]{0}', space=vmem, size = 0x2000, scoped, tag = 'output window, operand 0']
    #allocation12 [shape = 'u8[8192]{0}', space=vmem, size = 0x2000, scoped, tag = 'output window, operand 1']
    #allocation13 [shape = 's32[2]{0}', space=sflag, size = 0x8, scoped, tag = 'scoped memory for tpu_custom_call.1']
    %12 = vsyncpa [#allocation3], 0
    %s13 = scalar_lea.sflag [#allocation3], 1
    %14 = vsyncpa %s13, 0
    %15 = vsyncpa [#allocation6], 0
    %s16 = scalar_lea.sflag [#allocation6], 1
    %17 = vsyncpa %s16, 0
    %18 = vsyncpa [#allocation9], 0
    %s19 = scalar_lea.sflag [#allocation9], 1
    %20 = vsyncpa %s19, 0
    %21 = vsyncpa [#allocation4], 0
    %s22 = scalar_lea.sflag [#allocation4], 1
    %23 = vsyncpa %s22, 0
    %24 = vsyncpa [#allocation13], 0
    %s25 = scalar_lea.sflag [#allocation13], 1
    %26 = vsyncpa %s25, 0
    loop: start=0, step=1, limit=4
    $region2: #{tpu_custom_call.1} parent=1 // loop_pre_header
      _
    $region3: #{tpu_custom_call.1} parent=1 // loop_header
      %s28 = sphi 0, %s32
      %p29 = scmp.ge.s32.totalorder %s28, 4
      %s38 = sphi 0, %s40
      %s41 = sphi 0, %s38
      %s42 = sphi 0, %s41
      %s58 = sphi 0, %s42
      %s64 = sphi 0, %s66
      %s67 = sphi 0, %s64
      %s68 = sphi 0, %s67
      %s84 = sphi 0, %s68
      %s90 = sphi 0, %s92
      %s93 = sphi 0, %s90
      %s94 = sphi 0, %s93
      %s110 = sphi 0, %s94
      %s116 = sphi 0, %s118
      %s119 = sphi 0, %s116
      %s120 = sphi 0, %s119
      %s136 = sphi 0, %s120
      %s142 = sphi 0, %s144
      %s145 = sphi 0, %s142
      %s146 = sphi 0, %s145
      %s162 = sphi 0, %s146
      %s168 = sphi 0, %s170
      %s171 = sphi 0, %s168
      %s172 = sphi 0, %s171
      %s188 = sphi 0, %s172
      %s194 = sphi 0, %s196
      %s197 = sphi 0, %s194
      %s198 = sphi 0, %s197
      %s214 = sphi 0, %s198
    $region4: #{tpu_custom_call.1} parent=1 // loop_header_branch
      %31 = sbr.rel (%p29) target = $region8
    $region5: #{tpu_custom_call.1} parent=1 // loop_body
      %s33 = ssub.s32 %s28, 1
      %s34 = ssub.s32 %s28, 2
      %s35 = sadd.s32 %s28, 1
      %s36 = ssub.s32 %s28, %s35
      %p37 = scmp.eq.s32.totalorder %s36, 0
      %s39 = sadd.s32 %s38, 1
      %s40 = scalar_select %p37, %s38, %s39
      %p43 = pneg %p37
      %p44 = scmp.eq.s32.totalorder %s28, 1
      %p45 = por %p43, %p44
      %p46 = scmp.ne.s32.totalorder %s38, %s41
      %p47 = scmp.eq.s32.totalorder %s28, 0
      %p48 = por %p46, %p47
      %p49 = scmp.ne.s32.totalorder %s38, %s41
      %p50 = scmp.eq.s32.totalorder %s33, 1
      %p51 = por %p49, %p50
      %p52 = scmp.ne.s32.totalorder %s41, %s42
      %p53 = scmp.eq.s32.totalorder %s33, 0
      %p54 = por %p52, %p53
      %p55 = scmp.ne.s32.totalorder %s41, %s42
      %p56 = scmp.eq.s32.totalorder %s34, 1
      %p57 = por %p55, %p56
      %p59 = scmp.ne.s32.totalorder %s42, %s58
      %p60 = scmp.eq.s32.totalorder %s34, 0
      %p61 = por %p59, %p60
      %s62 = ssub.s32 %s28, %s35
      %p63 = scmp.eq.s32.totalorder %s62, 0
      %s65 = sadd.s32 %s64, 1
      %s66 = scalar_select %p63, %s64, %s65
      %p69 = pneg %p63
      %p70 = scmp.eq.s32.totalorder %s28, 1
      %p71 = por %p69, %p70
      %p72 = scmp.ne.s32.totalorder %s64, %s67
      %p73 = scmp.eq.s32.totalorder %s28, 0
      %p74 = por %p72, %p73
      %p75 = scmp.ne.s32.totalorder %s64, %s67
      %p76 = scmp.eq.s32.totalorder %s33, 1
      %p77 = por %p75, %p76
      %p78 = scmp.ne.s32.totalorder %s67, %s68
      %p79 = scmp.eq.s32.totalorder %s33, 0
      %p80 = por %p78, %p79
      %p81 = scmp.ne.s32.totalorder %s67, %s68
      %p82 = scmp.eq.s32.totalorder %s34, 1
      %p83 = por %p81, %p82
      %p85 = scmp.ne.s32.totalorder %s68, %s84
      %p86 = scmp.eq.s32.totalorder %s34, 0
      %p87 = por %p85, %p86
      %s88 = ssub.s32 %s28, %s35
      %p89 = scmp.eq.s32.totalorder %s88, 0
      %s91 = sadd.s32 %s90, 1
      %s92 = scalar_select %p89, %s90, %s91
      %p95 = pneg %p89
      %p96 = scmp.eq.s32.totalorder %s28, 1
      %p97 = por %p95, %p96
      %p98 = scmp.ne.s32.totalorder %s90, %s93
      %p99 = scmp.eq.s32.totalorder %s28, 0
      %p100 = por %p98, %p99
      %p101 = scmp.ne.s32.totalorder %s90, %s93
      %p102 = scmp.eq.s32.totalorder %s33, 1
      %p103 = por %p101, %p102
      %p104 = scmp.ne.s32.totalorder %s93, %s94
      %p105 = scmp.eq.s32.totalorder %s33, 0
      %p106 = por %p104, %p105
      %p107 = scmp.ne.s32.totalorder %s93, %s94
      %p108 = scmp.eq.s32.totalorder %s34, 1
      %p109 = por %p107, %p108
      %p111 = scmp.ne.s32.totalorder %s94, %s110
      %p112 = scmp.eq.s32.totalorder %s34, 0
      %p113 = por %p111, %p112
      %s114 = ssub.s32 %s28, %s35
      %p115 = scmp.eq.s32.totalorder %s114, 0
      %s117 = sadd.s32 %s116, 1
      %s118 = scalar_select %p115, %s116, %s117
      %p121 = pneg %p115
      %p122 = scmp.eq.s32.totalorder %s28, 1
      %p123 = por %p121, %p122
      %p124 = scmp.ne.s32.totalorder %s116, %s119
      %p125 = scmp.eq.s32.totalorder %s28, 0
      %p126 = por %p124, %p125
      %p127 = scmp.ne.s32.totalorder %s116, %s119
      %p128 = scmp.eq.s32.totalorder %s33, 1
      %p129 = por %p127, %p128
      %p130 = scmp.ne.s32.totalorder %s119, %s120
      %p131 = scmp.eq.s32.totalorder %s33, 0
      %p132 = por %p130, %p131
      %p133 = scmp.ne.s32.totalorder %s119, %s120
      %p134 = scmp.eq.s32.totalorder %s34, 1
      %p135 = por %p133, %p134
      %p137 = scmp.ne.s32.totalorder %s120, %s136
      %p138 = scmp.eq.s32.totalorder %s34, 0
      %p139 = por %p137, %p138
      %s140 = ssub.s32 %s28, %s35
      %p141 = scmp.eq.s32.totalorder %s140, 0
      %s143 = sadd.s32 %s142, 1
      %s144 = scalar_select %p141, %s142, %s143
      %p147 = pneg %p141
      %p148 = scmp.eq.s32.totalorder %s28, 1
      %p149 = por %p147, %p148
      %p150 = scmp.ne.s32.totalorder %s142, %s145
      %p151 = scmp.eq.s32.totalorder %s28, 0
      %p152 = por %p150, %p151
      %p153 = scmp.ne.s32.totalorder %s142, %s145
      %p154 = scmp.eq.s32.totalorder %s33, 1
      %p155 = por %p153, %p154
      %p156 = scmp.ne.s32.totalorder %s145, %s146
      %p157 = scmp.eq.s32.totalorder %s33, 0
      %p158 = por %p156, %p157
      %p159 = scmp.ne.s32.totalorder %s145, %s146
      %p160 = scmp.eq.s32.totalorder %s34, 1
      %p161 = por %p159, %p160
      %p163 = scmp.ne.s32.totalorder %s146, %s162
      %p164 = scmp.eq.s32.totalorder %s34, 0
      %p165 = por %p163, %p164
      %s166 = ssub.s32 %s28, %s35
      %p167 = scmp.eq.s32.totalorder %s166, 0
      %s169 = sadd.s32 %s168, 1
      %s170 = scalar_select %p167, %s168, %s169
      %p173 = pneg %p167
      %p174 = scmp.eq.s32.totalorder %s28, 1
      %p175 = por %p173, %p174
      %p176 = scmp.ne.s32.totalorder %s168, %s171
      %p177 = scmp.eq.s32.totalorder %s28, 0
      %p178 = por %p176, %p177
      %p179 = scmp.ne.s32.totalorder %s168, %s171
      %p180 = scmp.eq.s32.totalorder %s33, 1
      %p181 = por %p179, %p180
      %p182 = scmp.ne.s32.totalorder %s171, %s172
      %p183 = scmp.eq.s32.totalorder %s33, 0
      %p184 = por %p182, %p183
      %p185 = scmp.ne.s32.totalorder %s171, %s172
      %p186 = scmp.eq.s32.totalorder %s34, 1
      %p187 = por %p185, %p186
      %p189 = scmp.ne.s32.totalorder %s172, %s188
      %p190 = scmp.eq.s32.totalorder %s34, 0
      %p191 = por %p189, %p190
      %s192 = ssub.s32 %s28, %s35
      %p193 = scmp.eq.s32.totalorder %s192, 0
      %s195 = sadd.s32 %s194, 1
      %s196 = scalar_select %p193, %s194, %s195
      %p199 = pneg %p193
      %p200 = scmp.eq.s32.totalorder %s28, 1
      %p201 = por %p199, %p200
      %p202 = scmp.ne.s32.totalorder %s194, %s197
      %p203 = scmp.eq.s32.totalorder %s28, 0
      %p204 = por %p202, %p203
      %p205 = scmp.ne.s32.totalorder %s194, %s197
      %p206 = scmp.eq.s32.totalorder %s33, 1
      %p207 = por %p205, %p206
      %p208 = scmp.ne.s32.totalorder %s197, %s198
      %p209 = scmp.eq.s32.totalorder %s33, 0
      %p210 = por %p208, %p209
      %p211 = scmp.ne.s32.totalorder %s197, %s198
      %p212 = scmp.eq.s32.totalorder %s34, 1
      %p213 = por %p211, %p212
      %p215 = scmp.ne.s32.totalorder %s198, %s214
      %p216 = scmp.eq.s32.totalorder %s34, 0
      %p217 = por %p215, %p216
      %p218 = scmp.le.s32.totalorder 1, %s28
      %p219 = scmp.lt.s32.totalorder %s28, 3
      %p220 = pnand %p218, %p219
      %p221 = pneg %p220
      // Predicated region
      $region9: #{tpu_custom_call.1} parent=5 // pred_check
        _
      $region10: #{tpu_custom_call.1} parent=5 // pred_check_branch
        %223 = sbr.rel (%p220) target = $region12
      $region11: #{tpu_custom_call.1} parent=5 // pred_region
        %s224 = ssub.s32 %s28, 1
      $region12: #{tpu_custom_call.1} parent=5 // pred_fallthru
        _
      %p225 = scmp.lt.s32.totalorder %s28, 2
      // Predicated region
      $region13: #{tpu_custom_call.1} parent=5 // pred_check
        %p226 = pneg %p225
      $region14: #{tpu_custom_call.1} parent=5 // pred_check_branch
        %228 = sbr.rel (%p226) target = $region16
      $region15: #{tpu_custom_call.1} parent=5 // pred_region
        // Predicated region
        $region17: #{tpu_custom_call.1} parent=15 // pred_check
          %p229 = pneg %p48
        $region18: #{tpu_custom_call.1} parent=15 // pred_check_branch
          %231 = sbr.rel (%p229) target = $region20
        $region19: #{tpu_custom_call.1} parent=15 // pred_region
          %s232 = sand.u32 %s38, 1
          %s233 = scalar_lea.sflag [#allocation3], %s232
          %s234 = sand.u32 %s38, 1
          %s235 = smul.addr %s234, 8
          %s236 = scalar_lea.vmem [#allocation2], %s235
          %238 = vsyncadd %s233, 0
          %s239 = smul.addr %s28, 4
          %s240 = smul.addr %s239, 2
          %s241 = scalar_lea.hbm %s0, %s240
          %s242 = sshll.u32 %s241, 4
          %s243 = int_to_ptr.hbm [resolvable:$true] %s242
          %s244 = sshll.u32 %s236, 4
          %s245 = int_to_ptr.vmem [resolvable:$true] %s244
          %250 = dma.hbm_to_vmem [thread:$0]  %s243, 128, %s245, %s233, 32, 32, 2
        $region20: #{tpu_custom_call.1} parent=15 // pred_fallthru
          _
        // Predicated region
        $region21: #{tpu_custom_call.1} parent=15 // pred_check
          %p251 = pneg %p74
        $region22: #{tpu_custom_call.1} parent=15 // pred_check_branch
          %253 = sbr.rel (%p251) target = $region24
        $region23: #{tpu_custom_call.1} parent=15 // pred_region
          %s254 = sand.u32 %s28, 1
          %s255 = scalar_lea.sflag [#allocation6], %s254
          %s256 = sand.u32 %s64, 1
          %s257 = smul.addr %s256, 8
          %s258 = scalar_lea.vmem [#allocation5], %s257
          %260 = vsyncadd %s255, 0
          %s261 = smul.addr %s28, 4
          %s262 = smul.addr %s261, 2
          %s263 = scalar_lea.hbm %s1, %s262
          %s264 = sshll.u32 %s263, 4
          %s265 = int_to_ptr.hbm [resolvable:$true] %s264
          %s266 = sshll.u32 %s258, 4
          %s267 = int_to_ptr.vmem [resolvable:$true] %s266
          %272 = dma.hbm_to_vmem [thread:$0]  %s265, 128, %s267, %s255, 32, 32, 2
        $region24: #{tpu_custom_call.1} parent=15 // pred_fallthru
          _
        // Predicated region
        $region25: #{tpu_custom_call.1} parent=15 // pred_check
          %p273 = pneg %p100
        $region26: #{tpu_custom_call.1} parent=15 // pred_check_branch
          %275 = sbr.rel (%p273) target = $region28
        $region27: #{tpu_custom_call.1} parent=15 // pred_region
          %s276 = sand.u32 %s28, 1
          %s277 = scalar_lea.sflag [#allocation6], %s276
          %s278 = sand.u32 %s90, 1
          %s279 = smul.addr %s278, 16
          %s280 = scalar_lea.vmem [#allocation7], %s279
          %282 = vsyncadd %s277, 0
          %s283 = smul.addr %s28, 4
          %s284 = smul.addr %s283, 4
          %s285 = scalar_lea.hbm %s2, %s284
          %s286 = sshll.u32 %s285, 4
          %s287 = int_to_ptr.hbm [resolvable:$true] %s286
          %s288 = sshll.u32 %s280, 4
          %s289 = int_to_ptr.vmem [resolvable:$true] %s288
          %294 = dma.hbm_to_vmem [thread:$0]  %s287, 256, %s289, %s277, 64, 64, 4
        $region28: #{tpu_custom_call.1} parent=15 // pred_fallthru
          _
        // Predicated region
        $region29: #{tpu_custom_call.1} parent=15 // pred_check
          %p295 = pneg %p126
        $region30: #{tpu_custom_call.1} parent=15 // pred_check_branch
          %297 = sbr.rel (%p295) target = $region32
        $region31: #{tpu_custom_call.1} parent=15 // pred_region
          %s298 = sand.u32 %s28, 1
          %s299 = scalar_lea.sflag [#allocation9], %s298
          %s300 = sand.u32 %s116, 1
          %s301 = smul.addr %s300, 16
          %s302 = scalar_lea.vmem [#allocation8], %s301
          %304 = vsyncadd %s299, 0
          %s305 = smul.addr %s28, 4
          %s306 = smul.addr %s305, 4
          %s307 = scalar_lea.hbm %s3, %s306
          %s308 = sshll.u32 %s307, 4
          %s309 = int_to_ptr.hbm [resolvable:$true] %s308
          %s310 = sshll.u32 %s302, 4
          %s311 = int_to_ptr.vmem [resolvable:$true] %s310
          %316 = dma.hbm_to_vmem [thread:$0]  %s309, 256, %s311, %s299, 64, 64, 4
        $region32: #{tpu_custom_call.1} parent=15 // pred_fallthru
          _
        // Predicated region
        $region33: #{tpu_custom_call.1} parent=15 // pred_check
          %p317 = pneg %p152
        $region34: #{tpu_custom_call.1} parent=15 // pred_check_branch
          %319 = sbr.rel (%p317) target = $region36
        $region35: #{tpu_custom_call.1} parent=15 // pred_region
          %s320 = sand.u32 %s28, 1
          %s321 = scalar_lea.sflag [#allocation9], %s320
          %s322 = sand.u32 %s142, 1
          %s323 = smul.addr %s322, 16
          %s324 = scalar_lea.vmem [#allocation10], %s323
          %326 = vsyncadd %s321, 0
          %s327 = smul.addr %s28, 4
          %s328 = smul.addr %s327, 4
          %s329 = scalar_lea.hbm %s4, %s328
          %s330 = sshll.u32 %s329, 4
          %s331 = int_to_ptr.hbm [resolvable:$true] %s330
          %s332 = sshll.u32 %s324, 4
          %s333 = int_to_ptr.vmem [resolvable:$true] %s332
          %338 = dma.hbm_to_vmem [thread:$0]  %s331, 256, %s333, %s321, 64, 64, 4
        $region36: #{tpu_custom_call.1} parent=15 // pred_fallthru
          _
      $region16: #{tpu_custom_call.1} parent=5 // pred_fallthru
        _
      %p339 = scmp.le.s32.totalorder 1, %s28
      %p340 = scmp.lt.s32.totalorder %s28, 3
      %p341 = pnand %p339, %p340
      %p342 = pneg %p341
      // Predicated region
      $region37: #{tpu_custom_call.1} parent=5 // pred_check
        _
      $region38: #{tpu_custom_call.1} parent=5 // pred_check_branch
        %344 = sbr.rel (%p341) target = $region40
      $region39: #{tpu_custom_call.1} parent=5 // pred_region
        %s345 = ssub.s32 %s28, 1
        %s346 = sand.u32 %s41, 1
        %s347 = scalar_lea.sflag [#allocation3], %s346
        %s348 = sand.u32 %s41, 1
        %s349 = smul.addr %s348, 8
        %s350 = scalar_lea.vmem [#allocation2], %s349
        // Predicated region
        $region41: #{tpu_custom_call.1} parent=39 // pred_check
          %p351 = pneg %p54
        $region42: #{tpu_custom_call.1} parent=39 // pred_check_branch
          %353 = sbr.rel (%p351) target = $region44
        $region43: #{tpu_custom_call.1} parent=39 // pred_region
          %355 = dma.done %s347, 128
        $region44: #{tpu_custom_call.1} parent=39 // pred_fallthru
          _
        %s356 = sand.u32 %s33, 1
        %s357 = scalar_lea.sflag [#allocation6], %s356
        %s358 = sand.u32 %s67, 1
        %s359 = smul.addr %s358, 8
        %s360 = scalar_lea.vmem [#allocation5], %s359
        // Predicated region
        $region45: #{tpu_custom_call.1} parent=39 // pred_check
          %p361 = pneg %p80
        $region46: #{tpu_custom_call.1} parent=39 // pred_check_branch
          %363 = sbr.rel (%p361) target = $region48
        $region47: #{tpu_custom_call.1} parent=39 // pred_region
          %365 = dma.done %s357, 128
        $region48: #{tpu_custom_call.1} parent=39 // pred_fallthru
          _
        %s366 = sand.u32 %s33, 1
        %s367 = scalar_lea.sflag [#allocation6], %s366
        %s368 = sand.u32 %s93, 1
        %s369 = smul.addr %s368, 16
        %s370 = scalar_lea.vmem [#allocation7], %s369
        // Predicated region
        $region49: #{tpu_custom_call.1} parent=39 // pred_check
          %p371 = pneg %p106
        $region50: #{tpu_custom_call.1} parent=39 // pred_check_branch
          %373 = sbr.rel (%p371) target = $region52
        $region51: #{tpu_custom_call.1} parent=39 // pred_region
          %375 = dma.done %s367, 256
        $region52: #{tpu_custom_call.1} parent=39 // pred_fallthru
          _
        %s376 = sand.u32 %s33, 1
        %s377 = scalar_lea.sflag [#allocation9], %s376
        %s378 = sand.u32 %s119, 1
        %s379 = smul.addr %s378, 16
        %s380 = scalar_lea.vmem [#allocation8], %s379
        // Predicated region
        $region53: #{tpu_custom_call.1} parent=39 // pred_check
          %p381 = pneg %p132
        $region54: #{tpu_custom_call.1} parent=39 // pred_check_branch
          %383 = sbr.rel (%p381) target = $region56
        $region55: #{tpu_custom_call.1} parent=39 // pred_region
          %385 = dma.done %s377, 256
        $region56: #{tpu_custom_call.1} parent=39 // pred_fallthru
          _
        %s386 = sand.u32 %s33, 1
        %s387 = scalar_lea.sflag [#allocation9], %s386
        %s388 = sand.u32 %s145, 1
        %s389 = smul.addr %s388, 16
        %s390 = scalar_lea.vmem [#allocation10], %s389
        // Predicated region
        $region57: #{tpu_custom_call.1} parent=39 // pred_check
          %p391 = pneg %p158
        $region58: #{tpu_custom_call.1} parent=39 // pred_check_branch
          %393 = sbr.rel (%p391) target = $region60
        $region59: #{tpu_custom_call.1} parent=39 // pred_region
          %395 = dma.done %s387, 256
        $region60: #{tpu_custom_call.1} parent=39 // pred_fallthru
          _
        %s396 = sand.u32 %s41, 1
        %s397 = scalar_lea.sflag [#allocation3], %s396
        %s398 = sand.u32 %s41, 1
        %s399 = smul.addr %s398, 8
        %s400 = scalar_lea.vmem [#allocation2], %s399
        %p401 = pneg %p54
        %p402 = pneg %p51
        %s403 = sand.u32 %s33, 1
        %s404 = scalar_lea.sflag [#allocation6], %s403
        %s405 = sand.u32 %s67, 1
        %s406 = smul.addr %s405, 8
        %s407 = scalar_lea.vmem [#allocation5], %s406
        %p408 = pneg %p80
        %p409 = pneg %p77
        %s410 = sand.u32 %s33, 1
        %s411 = scalar_lea.sflag [#allocation6], %s410
        %s412 = sand.u32 %s93, 1
        %s413 = smul.addr %s412, 16
        %s414 = scalar_lea.vmem [#allocation7], %s413
        %p415 = pneg %p106
        %p416 = pneg %p103
        %s417 = sand.u32 %s33, 1
        %s418 = scalar_lea.sflag [#allocation9], %s417
        %s419 = sand.u32 %s119, 1
        %s420 = smul.addr %s419, 16
        %s421 = scalar_lea.vmem [#allocation8], %s420
        %p422 = pneg %p132
        %p423 = pneg %p129
        %s424 = sand.u32 %s33, 1
        %s425 = scalar_lea.sflag [#allocation9], %s424
        %s426 = sand.u32 %s145, 1
        %s427 = smul.addr %s426, 16
        %s428 = scalar_lea.vmem [#allocation10], %s427
        %p429 = pneg %p158
        %p430 = pneg %p155
        %p431 = pneg %p184
        %p432 = pneg %p181
        %s433 = sand.u32 %s171, 1
        %s434 = scalar_lea.sflag [#allocation4], %s433
        %s435 = sand.u32 %s171, 1
        %s436 = smul.addr %s435, 8
        %s437 = scalar_lea.vmem [#allocation11], %s436
        %p438 = pneg %p210
        %p439 = pneg %p207
        %s440 = sand.u32 %s197, 1
        %s441 = scalar_lea.sflag [#allocation13], %s440
        %s442 = sand.u32 %s197, 1
        %s443 = smul.addr %s442, 8
        %s444 = scalar_lea.vmem [#allocation12], %s443
        %v445 = vld [vmem:[%s350] sm:$0x3]
        %v446 = vld [vmem:[%s360] sm:$0x3]
        %v447 = vld [vmem:[%s370] sm:$0xf]
        %v448 = vld [vmem:[%s380] sm:$0xf]
        %v449 = vld [vmem:[%s390] sm:$0xf]
        %v450 = vadd.f32 %v445, %v446
        %v452 = vrot.slane %v450, 1
        %v453 = vperm.slane %v450, 0
        %v454 = vperm.slane %v452, 0
        %v457 = vmul.f32 %v453, %v447
        %v458 = vmul.f32 %v454, %v447
        %v460 = vrot.slane %v446, 1
        %v461 = vperm.slane %v446, 0
        %v462 = vperm.slane %v460, 0
        %v465 = vmul.f32 %v461, %v448
        %v466 = vmul.f32 %v462, %v448
        %v467 = vsub.f32 %v457, %v465
        %v468 = vsub.f32 %v458, %v466
        %v469 = vadd.f32 %v467, 0.0
        %v470 = vadd.f32 %v468, 0.0
        %v472 = vrot.slane %v445, 1
        %v473 = vperm.slane %v445, 0
        %v474 = vperm.slane %v472, 0
        %v477 = vmul.f32 %v473, %v449
        %v478 = vmul.f32 %v474, %v449
        %v479 = vadd.f32 %v457, %v477
        %v480 = vadd.f32 %v458, %v478
        %v481 = vadd.f32 %v479, 0.0
        %v482 = vadd.f32 %v480, 0.0
        %s483 = scalar_lea.vmem %s350, 2 [#allocation2]
        %v484 = vld [vmem:[%s483] sm:$0x3]
        %s485 = scalar_lea.vmem %s360, 2 [#allocation5]
        %v486 = vld [vmem:[%s485] sm:$0x3]
        %s487 = scalar_lea.vmem %s370, 4 [#allocation7]
        %v488 = vld [vmem:[%s487] sm:$0xf]
        %s489 = scalar_lea.vmem %s380, 4 [#allocation8]
        %v490 = vld [vmem:[%s489] sm:$0xf]
        %s491 = scalar_lea.vmem %s390, 4 [#allocation10]
        %v492 = vld [vmem:[%s491] sm:$0xf]
        %v493 = vadd.f32 %v484, %v486
        %v495 = vrot.slane %v493, 1
        %v496 = vperm.slane %v493, 0
        %v497 = vperm.slane %v495, 0
        %v500 = vmul.f32 %v496, %v488
        %v501 = vmul.f32 %v497, %v488
        %v503 = vrot.slane %v486, 1
        %v504 = vperm.slane %v486, 0
        %v505 = vperm.slane %v503, 0
        %v508 = vmul.f32 %v504, %v490
        %v509 = vmul.f32 %v505, %v490
        %v510 = vsub.f32 %v500, %v508
        %v511 = vsub.f32 %v501, %v509
        %v512 = vadd.f32 %v469, %v510
        %v513 = vadd.f32 %v470, %v511
        %v515 = vrot.slane %v484, 1
        %v516 = vperm.slane %v484, 0
        %v517 = vperm.slane %v515, 0
        %v520 = vmul.f32 %v516, %v492
        %v521 = vmul.f32 %v517, %v492
        %v522 = vadd.f32 %v500, %v520
        %v523 = vadd.f32 %v501, %v521
        %v524 = vadd.f32 %v481, %v522
        %v525 = vadd.f32 %v482, %v523
        %s526 = scalar_lea.vmem %s350, 4 [#allocation2]
        %v527 = vld [vmem:[%s526] sm:$0x3]
        %s528 = scalar_lea.vmem %s360, 4 [#allocation5]
        %v529 = vld [vmem:[%s528] sm:$0x3]
        %s530 = scalar_lea.vmem %s370, 8 [#allocation7]
        %v531 = vld [vmem:[%s530] sm:$0xf]
        %s532 = scalar_lea.vmem %s380, 8 [#allocation8]
        %v533 = vld [vmem:[%s532] sm:$0xf]
        %s534 = scalar_lea.vmem %s390, 8 [#allocation10]
        %v535 = vld [vmem:[%s534] sm:$0xf]
        %v536 = vadd.f32 %v527, %v529
        %v538 = vrot.slane %v536, 1
        %v539 = vperm.slane %v536, 0
        %v540 = vperm.slane %v538, 0
        %v543 = vmul.f32 %v539, %v531
        %v544 = vmul.f32 %v540, %v531
        %v546 = vrot.slane %v529, 1
        %v547 = vperm.slane %v529, 0
        %v548 = vperm.slane %v546, 0
        %v551 = vmul.f32 %v547, %v533
        %v552 = vmul.f32 %v548, %v533
        %v553 = vsub.f32 %v543, %v551
        %v554 = vsub.f32 %v544, %v552
        %v555 = vadd.f32 %v512, %v553
        %v556 = vadd.f32 %v513, %v554
        %v558 = vrot.slane %v527, 1
        %v559 = vperm.slane %v527, 0
        %v560 = vperm.slane %v558, 0
        %v563 = vmul.f32 %v559, %v535
        %v564 = vmul.f32 %v560, %v535
        %v565 = vadd.f32 %v543, %v563
        %v566 = vadd.f32 %v544, %v564
        %v567 = vadd.f32 %v524, %v565
        %v568 = vadd.f32 %v525, %v566
        %s569 = scalar_lea.vmem %s350, 6 [#allocation2]
        %v570 = vld [vmem:[%s569] sm:$0x3]
        %s571 = scalar_lea.vmem %s360, 6 [#allocation5]
        %v572 = vld [vmem:[%s571] sm:$0x3]
        %s573 = scalar_lea.vmem %s370, 12 [#allocation7]
        %v574 = vld [vmem:[%s573] sm:$0xf]
        %s575 = scalar_lea.vmem %s380, 12 [#allocation8]
        %v576 = vld [vmem:[%s575] sm:$0xf]
        %s577 = scalar_lea.vmem %s390, 12 [#allocation10]
        %v578 = vld [vmem:[%s577] sm:$0xf]
        %v579 = vadd.f32 %v570, %v572
        %v581 = vrot.slane %v579, 1
        %v582 = vperm.slane %v579, 0
        %v583 = vperm.slane %v581, 0
        %v586 = vmul.f32 %v582, %v574
        %v587 = vmul.f32 %v583, %v574
        %v589 = vrot.slane %v572, 1
        %v590 = vperm.slane %v572, 0
        %v591 = vperm.slane %v589, 0
        %v594 = vmul.f32 %v590, %v576
        %v595 = vmul.f32 %v591, %v576
        %v596 = vsub.f32 %v586, %v594
        %v597 = vsub.f32 %v587, %v595
        %v598 = vadd.f32 %v555, %v596
        %v599 = vadd.f32 %v556, %v597
        %v601 = vrot.slane %v570, 1
        %v602 = vperm.slane %v570, 0
        %v603 = vperm.slane %v601, 0
        %v606 = vmul.f32 %v602, %v578
        %v607 = vmul.f32 %v603, %v578
        %v608 = vadd.f32 %v586, %v606
        %v609 = vadd.f32 %v587, %v607
        %v610 = vadd.f32 %v567, %v608
        %v611 = vadd.f32 %v568, %v609
        %612 = vst [vmem:[%s437] sm:$0xf] %v598
        %613 = vst [vmem:[%s437 + $0x4] sm:$0xf] %v599
        %614 = vst [vmem:[%s444] sm:$0xf] %v610
        %615 = vst [vmem:[%s444 + $0x4] sm:$0xf] %v611
        %s616 = sand.u32 %s171, 1
        %s617 = scalar_lea.sflag [#allocation4], %s616
        %s618 = sand.u32 %s171, 1
        %s619 = smul.addr %s618, 8
        %s620 = scalar_lea.vmem [#allocation11], %s619
        %s621 = sand.u32 %s197, 1
        %s622 = scalar_lea.sflag [#allocation13], %s621
        %s623 = sand.u32 %s197, 1
        %s624 = smul.addr %s623, 8
        %s625 = scalar_lea.vmem [#allocation12], %s624
        // Predicated region
        $region61: #{tpu_custom_call.1} parent=39 // pred_check
          %p626 = pneg %p181
        $region62: #{tpu_custom_call.1} parent=39 // pred_check_branch
          %628 = sbr.rel (%p626) target = $region64
        $region63: #{tpu_custom_call.1} parent=39 // pred_region
          %630 = vsyncadd %s617, 0
          %s631 = smul.addr %s33, 2
          %s632 = smul.addr %s631, 4
          %s633 = scalar_lea.hbm %s5, %s632
          %s634 = sshll.u32 %s620, 4
          %s635 = int_to_ptr.vmem [resolvable:$true] %s634
          %s636 = sshll.u32 %s633, 4
          %s637 = int_to_ptr.hbm [resolvable:$true] %s636
          %642 = dma.vmem_to_hbm [thread:$0]  %s635, 128, %s637, %s617, 64, 64, 4
        $region64: #{tpu_custom_call.1} parent=39 // pred_fallthru
          _
        // Predicated region
        $region65: #{tpu_custom_call.1} parent=39 // pred_check
          %p643 = pneg %p207
        $region66: #{tpu_custom_call.1} parent=39 // pred_check_branch
          %645 = sbr.rel (%p643) target = $region68
        $region67: #{tpu_custom_call.1} parent=39 // pred_region
          %647 = vsyncadd %s622, 0
          %s648 = smul.addr %s33, 2
          %s649 = smul.addr %s648, 4
          %s650 = scalar_lea.hbm %s6, %s649
          %s651 = sshll.u32 %s625, 4
          %s652 = int_to_ptr.vmem [resolvable:$true] %s651
          %s653 = sshll.u32 %s650, 4
          %s654 = int_to_ptr.hbm [resolvable:$true] %s653
          %659 = dma.vmem_to_hbm [thread:$0]  %s652, 128, %s654, %s622, 64, 64, 4
        $region68: #{tpu_custom_call.1} parent=39 // pred_fallthru
          _
      $region40: #{tpu_custom_call.1} parent=5 // pred_fallthru
        _
      %p660 = scmp.le.s32.totalorder 2, %s28
      // Predicated region
      $region69: #{tpu_custom_call.1} parent=5 // pred_check
        %p661 = pneg %p660
      $region70: #{tpu_custom_call.1} parent=5 // pred_check_branch
        %663 = sbr.rel (%p661) target = $region72
      $region71: #{tpu_custom_call.1} parent=5 // pred_region
        %s664 = ssub.s32 %s28, 2
        // Predicated region
        $region73: #{tpu_custom_call.1} parent=71 // pred_check
          %p665 = pneg %p187
        $region74: #{tpu_custom_call.1} parent=71 // pred_check_branch
          %667 = sbr.rel (%p665) target = $region76
        $region75: #{tpu_custom_call.1} parent=71 // pred_region
          %s668 = sand.u32 %s172, 1
          %s669 = scalar_lea.sflag [#allocation4], %s668
          %s670 = sand.u32 %s172, 1
          %s671 = smul.addr %s670, 8
          %s672 = scalar_lea.vmem [#allocation11], %s671
          %674 = dma.done %s669, 128
        $region76: #{tpu_custom_call.1} parent=71 // pred_fallthru
          _
        // Predicated region
        $region77: #{tpu_custom_call.1} parent=71 // pred_check
          %p675 = pneg %p213
        $region78: #{tpu_custom_call.1} parent=71 // pred_check_branch
          %677 = sbr.rel (%p675) target = $region80
        $region79: #{tpu_custom_call.1} parent=71 // pred_region
          %s678 = sand.u32 %s198, 1
          %s679 = scalar_lea.sflag [#allocation13], %s678
          %s680 = sand.u32 %s198, 1
          %s681 = smul.addr %s680, 8
          %s682 = scalar_lea.vmem [#allocation12], %s681
          %684 = dma.done %s679, 128
        $region80: #{tpu_custom_call.1} parent=71 // pred_fallthru
          _
      $region72: #{tpu_custom_call.1} parent=5 // pred_fallthru
        _
    $region6: #{tpu_custom_call.1} parent=1 // loop_footer
      %s32 = sadd.s32 1, %s28
    $region7: #{tpu_custom_call.1} parent=1 // loop_footer_branch
      %27 = sbr.rel target = $region3
    $region8: #{tpu_custom_call.1} parent=1 // loop_exit
      _
    %685 = vsyncpa [#allocation3], 1
    %s686 = scalar_lea.sflag [#allocation3], 1
    %687 = vsyncpa %s686, 1
    %688 = vsyncpa [#allocation6], 1
    %s689 = scalar_lea.sflag [#allocation6], 1
    %690 = vsyncpa %s689, 1
    %691 = vsyncpa [#allocation9], 1
    %s692 = scalar_lea.sflag [#allocation9], 1
    %693 = vsyncpa %s692, 1
    %694 = vsyncpa [#allocation4], 1
    %s695 = scalar_lea.sflag [#allocation4], 1
    %696 = vsyncpa %s695, 1
    %697 = vsyncpa [#allocation13], 1
    %s698 = scalar_lea.sflag [#allocation13], 1
    %699 = vsyncpa %s698, 1

</llo_original>
